<compile_context>
chip_gen: v7x
topology: tpu7x:2x2x1
jax: 0.10.0
libtpu: 0.0.40
codegen_flags: <defaults>
</compile_context>

<pallas_src>
import jax
import jax.numpy as jnp
from jax.experimental import pallas as pl
from jax.experimental.pallas import tpu as pltpu


HIDDEN = (64, 128, 128, 64, 32)
FEAT = 128  # lane-padded width used for every layer inside the kernel


def _round_up(x, m):
    return (x + m - 1) // m * m


def _dqn_kernel(x_ref, w_ref, b_ref, o_ref):
    """All six Linear(+ReLU) layers fused in one kernel body.

    x_ref: (TB, FEAT)       f32 activations (lane-padded observations)
    w_ref: (L, FEAT, FEAT)  bf16 packed, zero-padded weights in (in, out) layout
    b_ref: (L, 1, FEAT)     f32 packed, zero-padded biases
    o_ref: (TB, FEAT)       f32 output (caller slices the real action_dim)
    """
    n_layers = w_ref.shape[0]
    h = x_ref[...]                                    # f32
    for i in range(n_layers):                         # static unroll over 6 layers
        # bf16 operands feed the MXU natively; accumulate in f32.
        y = jnp.dot(h.astype(jnp.bfloat16), w_ref[i],
                    preferred_element_type=jnp.float32)
        y = y + b_ref[i]                              # (1, FEAT) broadcast, f32 VPU
        h = jnp.maximum(y, 0.0) if i < n_layers - 1 else y
    o_ref[...] = h


def _preferred_batch_tile():
    kind = jax.devices()[0].device_kind.lower()
    return 256 if ("v6" in kind or "v7" in kind) else 128


def dq_network_forward(x, w_packed, b_packed, action_dim, batch_tile=None):
    """x: (batch, obs_dim) f32. w_packed: (L,FEAT,FEAT) bf16. b_packed: (L,1,FEAT) f32."""
    batch, obs_dim = x.shape
    n_layers = w_packed.shape[0]

    if batch_tile is None:
        batch_tile = _preferred_batch_tile()
    tb = min(batch_tile, _round_up(batch, 8))         # don't over-pad tiny batches
    padded_batch = _round_up(batch, tb)

    # Lane-pad the observations to FEAT and pad batch up to a tile multiple.
    x_padded = jnp.zeros((padded_batch, FEAT), jnp.float32)
    x_padded = x_padded.at[:batch, :obs_dim].set(x.astype(jnp.float32))

    out = pl.pallas_call(
        _dqn_kernel,
        out_shape=jax.ShapeDtypeStruct((padded_batch, FEAT), jnp.float32),
        grid=(padded_batch // tb,),
        in_specs=[
            pl.BlockSpec((tb, FEAT), lambda i: (i, 0)),
            # Constant index maps -> params stay VMEM-resident across batch tiles.
            pl.BlockSpec((n_layers, FEAT, FEAT), lambda i: (0, 0, 0)),
            pl.BlockSpec((n_layers, 1, FEAT), lambda i: (0, 0, 0)),
        ],
        out_specs=pl.BlockSpec((tb, FEAT), lambda i: (i, 0)),
        compiler_params=pltpu.CompilerParams(
            dimension_semantics=("parallel",)),
    )(x_padded, w_packed, b_packed)

    return out[:batch, :action_dim]


def init_params(key, obs_dim, action_dim):
    """nn.Linear-style init (uniform +/- 1/sqrt(fan_in)) at the real (unpadded) dims."""
    dims = (obs_dim,) + HIDDEN + (action_dim,)
    params = []
    for i in range(len(dims) - 1):
        fan_in, fan_out = dims[i], dims[i + 1]
        key, kw, kb = jax.random.split(key, 3)
        bound = 1.0 / (fan_in ** 0.5)
        w = jax.random.uniform(kw, (fan_in, fan_out), jnp.float32, -bound, bound)
        b = jax.random.uniform(kb, (fan_out,), jnp.float32, -bound, bound)
        params.append((w, b))
    return params


def pack_params(params):
    """Zero-pad every layer to (FEAT, FEAT)/(1, FEAT) and stack into two buffers."""
    n = len(params)
    w_packed = jnp.zeros((n, FEAT, FEAT), jnp.bfloat16)
    b_packed = jnp.zeros((n, 1, FEAT), jnp.float32)
    for i, (w, b) in enumerate(params):
        fi, fo = w.shape
        w_packed = w_packed.at[i, :fi, :fo].set(w.astype(jnp.bfloat16))
        b_packed = b_packed.at[i, 0, :fo].set(b)
    return w_packed, b_packed


def reference_forward(x, params):
    """Plain-JAX reference with the same bf16-weight / f32-accumulate numerics."""
    h = x.astype(jnp.float32)
    for i, (w, b) in enumerate(params):
        h = jnp.dot(h.astype(jnp.bfloat16), w.astype(jnp.bfloat16),
                    preferred_element_type=jnp.float32) + b
        if i < len(params) - 1:
            h = jnp.maximum(h, 0.0)
    return h


if __name__ == "__main__":
    key = jax.random.PRNGKey(0)
    batch, obs_dim, action_dim = 8, 16, 4

    key, kx = jax.random.split(key)
    x = jax.random.normal(kx, (batch, obs_dim), jnp.float32)
    params = init_params(key, obs_dim, action_dim)
    w_packed, b_packed = pack_params(params)

    out = dq_network_forward(x, w_packed, b_packed, action_dim)
    out = jax.block_until_ready(out)

    ref = reference_forward(x, params)
    assert out.shape == (batch, action_dim)
    assert jnp.allclose(out, ref, atol=2e-2, rtol=2e-2), "mismatch vs reference"

    print("KERNEL_OK")
</pallas_src>

<mosaic_0001>
module attributes {stable_mosaic.version = 11 : i64} {
  func.func @_dqn_kernel(%arg0: i32, %arg1: memref<8x128xf32, #tpu.memory_space<vmem>>, %arg2: memref<6x128x128xbf16, #tpu.memory_space<vmem>>, %arg3: memref<6x1x128xf32, #tpu.memory_space<vmem>>, %arg4: memref<8x128xf32, #tpu.memory_space<vmem>>) attributes {dimension_semantics = [#tpu.dimension_semantics<parallel>], iteration_bounds = array<i64: 1>, scalar_prefetch = 0 : i64, scratch_operands = 0 : i64, tpu.core_type = #tpu.core_type<tc>, window_params = [{transform_indices = @transform_0, window_bounds = array<i64: 8, 128>}, {pipeline_mode = #tpu.pipeline_mode<synchronous>, transform_indices = @transform_1, window_bounds = array<i64: 6, 128, 128>}, {pipeline_mode = #tpu.pipeline_mode<synchronous>, transform_indices = @transform_2, window_bounds = array<i64: 6, 1, 128>}, {transform_indices = @transform_3, window_bounds = array<i64: 8, 128>}]} {
    %c0 = arith.constant 0 : index
    %c0_0 = arith.constant 0 : index
    %0 = vector.load %arg1[%c0, %c0_0] : memref<8x128xf32, #tpu.memory_space<vmem>>, vector<8x128xf32>
    %1 = arith.truncf %0 : vector<8x128xf32> to vector<8x128xbf16>
    %c0_1 = arith.constant 0 : index
    %c0_2 = arith.constant 0 : index
    %c0_3 = arith.constant 0 : index
    %2 = vector.load %arg2[%c0_1, %c0_2, %c0_3] : memref<6x128x128xbf16, #tpu.memory_space<vmem>>, vector<1x128x128xbf16>
    %3 = vector.shape_cast %2 : vector<1x128x128xbf16> to vector<128x128xbf16>
    %cst = arith.constant dense<0.000000e+00> : vector<8x128xf32>
    %4 = tpu.matmul %1, %3, %cst {dimension_numbers = #tpu.dot_dimension_numbers<[1], [0], [0], [1], [0, 0, 1, 1], [], []>} : vector<8x128xbf16>, vector<128x128xbf16>, vector<8x128xf32> -> vector<8x128xf32>
    %c0_4 = arith.constant 0 : index
    %c0_5 = arith.constant 0 : index
    %c0_6 = arith.constant 0 : index
    %5 = vector.load %arg3[%c0_4, %c0_5, %c0_6] : memref<6x1x128xf32, #tpu.memory_space<vmem>>, vector<1x1x128xf32>
    %6 = vector.shape_cast %5 : vector<1x1x128xf32> to vector<1x128xf32>
    %7 = vector.broadcast %6 : vector<1x128xf32> to vector<8x128xf32>
    %8 = arith.addf %4, %7 : vector<8x128xf32>
    %cst_7 = arith.constant 0.000000e+00 : f32
    %9 = vector.broadcast %cst_7 : f32 to vector<8x128xf32>
    %10 = arith.maximumf %8, %9 : vector<8x128xf32>
    %11 = arith.truncf %10 : vector<8x128xf32> to vector<8x128xbf16>
    %c1 = arith.constant 1 : index
    %c0_8 = arith.constant 0 : index
    %c0_9 = arith.constant 0 : index
    %12 = vector.load %arg2[%c1, %c0_8, %c0_9] : memref<6x128x128xbf16, #tpu.memory_space<vmem>>, vector<1x128x128xbf16>
    %13 = vector.shape_cast %12 : vector<1x128x128xbf16> to vector<128x128xbf16>
    %cst_10 = arith.constant dense<0.000000e+00> : vector<8x128xf32>
    %14 = tpu.matmul %11, %13, %cst_10 {dimension_numbers = #tpu.dot_dimension_numbers<[1], [0], [0], [1], [0, 0, 1, 1], [], []>} : vector<8x128xbf16>, vector<128x128xbf16>, vector<8x128xf32> -> vector<8x128xf32>
    %c1_11 = arith.constant 1 : index
    %c0_12 = arith.constant 0 : index
    %c0_13 = arith.constant 0 : index
    %15 = vector.load %arg3[%c1_11, %c0_12, %c0_13] : memref<6x1x128xf32, #tpu.memory_space<vmem>>, vector<1x1x128xf32>
    %16 = vector.shape_cast %15 : vector<1x1x128xf32> to vector<1x128xf32>
    %17 = vector.broadcast %16 : vector<1x128xf32> to vector<8x128xf32>
    %18 = arith.addf %14, %17 : vector<8x128xf32>
    %cst_14 = arith.constant 0.000000e+00 : f32
    %19 = vector.broadcast %cst_14 : f32 to vector<8x128xf32>
    %20 = arith.maximumf %18, %19 : vector<8x128xf32>
    %21 = arith.truncf %20 : vector<8x128xf32> to vector<8x128xbf16>
    %c2 = arith.constant 2 : index
    %c0_15 = arith.constant 0 : index
    %c0_16 = arith.constant 0 : index
    %22 = vector.load %arg2[%c2, %c0_15, %c0_16] : memref<6x128x128xbf16, #tpu.memory_space<vmem>>, vector<1x128x128xbf16>
    %23 = vector.shape_cast %22 : vector<1x128x128xbf16> to vector<128x128xbf16>
    %cst_17 = arith.constant dense<0.000000e+00> : vector<8x128xf32>
    %24 = tpu.matmul %21, %23, %cst_17 {dimension_numbers = #tpu.dot_dimension_numbers<[1], [0], [0], [1], [0, 0, 1, 1], [], []>} : vector<8x128xbf16>, vector<128x128xbf16>, vector<8x128xf32> -> vector<8x128xf32>
    %c2_18 = arith.constant 2 : index
    %c0_19 = arith.constant 0 : index
    %c0_20 = arith.constant 0 : index
    %25 = vector.load %arg3[%c2_18, %c0_19, %c0_20] : memref<6x1x128xf32, #tpu.memory_space<vmem>>, vector<1x1x128xf32>
    %26 = vector.shape_cast %25 : vector<1x1x128xf32> to vector<1x128xf32>
    %27 = vector.broadcast %26 : vector<1x128xf32> to vector<8x128xf32>
    %28 = arith.addf %24, %27 : vector<8x128xf32>
    %cst_21 = arith.constant 0.000000e+00 : f32
    %29 = vector.broadcast %cst_21 : f32 to vector<8x128xf32>
    %30 = arith.maximumf %28, %29 : vector<8x128xf32>
    %31 = arith.truncf %30 : vector<8x128xf32> to vector<8x128xbf16>
    %c3 = arith.constant 3 : index
    %c0_22 = arith.constant 0 : index
    %c0_23 = arith.constant 0 : index
    %32 = vector.load %arg2[%c3, %c0_22, %c0_23] : memref<6x128x128xbf16, #tpu.memory_space<vmem>>, vector<1x128x128xbf16>
    %33 = vector.shape_cast %32 : vector<1x128x128xbf16> to vector<128x128xbf16>
    %cst_24 = arith.constant dense<0.000000e+00> : vector<8x128xf32>
    %34 = tpu.matmul %31, %33, %cst_24 {dimension_numbers = #tpu.dot_dimension_numbers<[1], [0], [0], [1], [0, 0, 1, 1], [], []>} : vector<8x128xbf16>, vector<128x128xbf16>, vector<8x128xf32> -> vector<8x128xf32>
    %c3_25 = arith.constant 3 : index
    %c0_26 = arith.constant 0 : index
    %c0_27 = arith.constant 0 : index
    %35 = vector.load %arg3[%c3_25, %c0_26, %c0_27] : memref<6x1x128xf32, #tpu.memory_space<vmem>>, vector<1x1x128xf32>
    %36 = vector.shape_cast %35 : vector<1x1x128xf32> to vector<1x128xf32>
    %37 = vector.broadcast %36 : vector<1x128xf32> to vector<8x128xf32>
    %38 = arith.addf %34, %37 : vector<8x128xf32>
    %cst_28 = arith.constant 0.000000e+00 : f32
    %39 = vector.broadcast %cst_28 : f32 to vector<8x128xf32>
    %40 = arith.maximumf %38, %39 : vector<8x128xf32>
    %41 = arith.truncf %40 : vector<8x128xf32> to vector<8x128xbf16>
    %c4 = arith.constant 4 : index
    %c0_29 = arith.constant 0 : index
    %c0_30 = arith.constant 0 : index
    %42 = vector.load %arg2[%c4, %c0_29, %c0_30] : memref<6x128x128xbf16, #tpu.memory_space<vmem>>, vector<1x128x128xbf16>
    %43 = vector.shape_cast %42 : vector<1x128x128xbf16> to vector<128x128xbf16>
    %cst_31 = arith.constant dense<0.000000e+00> : vector<8x128xf32>
    %44 = tpu.matmul %41, %43, %cst_31 {dimension_numbers = #tpu.dot_dimension_numbers<[1], [0], [0], [1], [0, 0, 1, 1], [], []>} : vector<8x128xbf16>, vector<128x128xbf16>, vector<8x128xf32> -> vector<8x128xf32>
    %c4_32 = arith.constant 4 : index
    %c0_33 = arith.constant 0 : index
    %c0_34 = arith.constant 0 : index
    %45 = vector.load %arg3[%c4_32, %c0_33, %c0_34] : memref<6x1x128xf32, #tpu.memory_space<vmem>>, vector<1x1x128xf32>
    %46 = vector.shape_cast %45 : vector<1x1x128xf32> to vector<1x128xf32>
    %47 = vector.broadcast %46 : vector<1x128xf32> to vector<8x128xf32>
    %48 = arith.addf %44, %47 : vector<8x128xf32>
    %cst_35 = arith.constant 0.000000e+00 : f32
    %49 = vector.broadcast %cst_35 : f32 to vector<8x128xf32>
    %50 = arith.maximumf %48, %49 : vector<8x128xf32>
    %51 = arith.truncf %50 : vector<8x128xf32> to vector<8x128xbf16>
    %c5 = arith.constant 5 : index
    %c0_36 = arith.constant 0 : index
    %c0_37 = arith.constant 0 : index
    %52 = vector.load %arg2[%c5, %c0_36, %c0_37] : memref<6x128x128xbf16, #tpu.memory_space<vmem>>, vector<1x128x128xbf16>
    %53 = vector.shape_cast %52 : vector<1x128x128xbf16> to vector<128x128xbf16>
    %cst_38 = arith.constant dense<0.000000e+00> : vector<8x128xf32>
    %54 = tpu.matmul %51, %53, %cst_38 {dimension_numbers = #tpu.dot_dimension_numbers<[1], [0], [0], [1], [0, 0, 1, 1], [], []>} : vector<8x128xbf16>, vector<128x128xbf16>, vector<8x128xf32> -> vector<8x128xf32>
    %c5_39 = arith.constant 5 : index
    %c0_40 = arith.constant 0 : index
    %c0_41 = arith.constant 0 : index
    %55 = vector.load %arg3[%c5_39, %c0_40, %c0_41] : memref<6x1x128xf32, #tpu.memory_space<vmem>>, vector<1x1x128xf32>
    %56 = vector.shape_cast %55 : vector<1x1x128xf32> to vector<1x128xf32>
    %57 = vector.broadcast %56 : vector<1x128xf32> to vector<8x128xf32>
    %58 = arith.addf %54, %57 : vector<8x128xf32>
    %c0_42 = arith.constant 0 : index
    %c0_43 = arith.constant 0 : index
    %59 = vector.load %arg4[%c0_42, %c0_43] : memref<8x128xf32, #tpu.memory_space<vmem>>, vector<8x128xf32>
    tpu.vector_store %arg4[%c0_42, %c0_43], %58 {strides = array<i32>} : memref<8x128xf32, #tpu.memory_space<vmem>>, vector<8x128xf32>,
    return
  }
  func.func @transform_0(%arg0: i32) -> (i32, i32) {
    %c0_i32 = arith.constant 0 : i32
    %c0_i32_0 = arith.constant 0 : i32
    return %arg0, %c0_i32 : i32, i32
  }
  func.func @transform_1(%arg0: i32) -> (i32, i32, i32) {
    %c0_i32 = arith.constant 0 : i32
    %c0_i32_0 = arith.constant 0 : i32
    %c0_i32_1 = arith.constant 0 : i32
    %c0_i32_2 = arith.constant 0 : i32
    return %c0_i32, %c0_i32_0, %c0_i32_1 : i32, i32, i32
  }
  func.func @transform_2(%arg0: i32) -> (i32, i32, i32) {
    %c0_i32 = arith.constant 0 : i32
    %c0_i32_0 = arith.constant 0 : i32
    %c0_i32_1 = arith.constant 0 : i32
    %c0_i32_2 = arith.constant 0 : i32
    return %c0_i32, %c0_i32_0, %c0_i32_1 : i32, i32, i32
  }
  func.func @transform_3(%arg0: i32) -> (i32, i32) {
    %c0_i32 = arith.constant 0 : i32
    %c0_i32_0 = arith.constant 0 : i32
    return %arg0, %c0_i32 : i32, i32
  }
}

</mosaic_0001>

<llo_original>
// kernel: tpu_custom_call.1
$region0: #{tpu_custom_call.1}
  #allocation0 [shape = 'u32[]', space=smem, size = 0x4, offset = 0x4, fixed_abs, tag = 'smem constant byte address 0x4 - core index']
  #allocation1 [shape = 'u32[144,128]{1,0:T(1,128)}', space=vmem, size = 0x12000, scoped, tag = 'internal scratch']
  %s0 = inlined_call_operand.hbm [shape: f32[8,128], index: 0, kind: input, shape index: {}]
  %s1 = inlined_call_operand.hbm [shape: bf16[6,128,128], index: 1, kind: input, shape index: {}]
  %s2 = inlined_call_operand.vmem [shape: f32[6,1,128], index: 2, kind: input, shape index: {}]
  %s3 = inlined_call_operand.hbm [shape: f32[8,128], index: 3, kind: output, shape index: {}]
  %s4 = sld [smem:[#allocation0]]
  $region30: #{tpu_custom_call.1} parent=0
    _
  %s6 = ssub.s32 1, %s4
  %s7 = scalar_select 0, %s6, %s4
  $region1: #{tpu_custom_call.1} parent=0
    #allocation2 [shape = 'u8[4096]{0}', space=vmem, size = 0x1000, scoped, tag = 'input window, operand 0, single buffered']
    #allocation3 [shape = 's32[1]{0}', space=sflag, size = 0x4, scoped, tag = 'scoped memory for tpu_custom_call.1']
    #allocation4 [shape = 's32[1]{0}', space=sflag, size = 0x4, scoped, tag = 'scoped memory for tpu_custom_call.1']
    #allocation5 [shape = 'u8[196608]{0}', space=vmem, size = 0x30000, scoped, tag = 'input window, operand 1, single buffered']
    #allocation6 [shape = 's32[1]{0}', space=sflag, size = 0x4, scoped, tag = 'scoped memory for tpu_custom_call.1']
    #allocation7 [shape = 'u8[4096]{0}', space=vmem, size = 0x1000, scoped, tag = 'output window, operand 0, single buffered']
    %8 = vsyncpa [#allocation3], 0
    %9 = vsyncpa [#allocation6], 0
    %10 = vsyncpa [#allocation4], 0
    // Predicated region
    $region2: #{tpu_custom_call.1} parent=1 // pred_check
      _
    $region3: #{tpu_custom_call.1} parent=1 // pred_check_branch
      %12 = sbr.rel (0) target = $region5
    $region4: #{tpu_custom_call.1} parent=1 // pred_region
      %s14 = ssub.s32 128, 128
      %15 = vsyncadd [#allocation3], %s14
      %s17 = sshll.u32 [#allocation2], 4
      %s18 = int_to_ptr.vmem [resolvable:$true] %s17
      %20 = dma.hbm_to_vmem [thread:$0]  %s0, 128, %s18, [#allocation3]
    $region5: #{tpu_custom_call.1} parent=1 // pred_fallthru
      _
    // Predicated region
    $region6: #{tpu_custom_call.1} parent=1 // pred_check
      _
    $region7: #{tpu_custom_call.1} parent=1 // pred_check_branch
      %22 = sbr.rel (0) target = $region9
    $region8: #{tpu_custom_call.1} parent=1 // pred_region
      %s24 = ssub.s32 6144, 6144
      %25 = vsyncadd [#allocation6], %s24
      %s26 = sshll.u32 [#allocation5], 4
      %s27 = int_to_ptr.vmem [resolvable:$true] %s26
      %32 = dma.hbm_to_vmem [thread:$0]  %s1, 6144, %s27, [#allocation6], 64, 64, 4
    $region9: #{tpu_custom_call.1} parent=1 // pred_fallthru
      _
    // Predicated region
    $region10: #{tpu_custom_call.1} parent=1 // pred_check
      _
    $region11: #{tpu_custom_call.1} parent=1 // pred_check_branch
      %34 = sbr.rel (0) target = $region13
    $region12: #{tpu_custom_call.1} parent=1 // pred_region
      _
    $region13: #{tpu_custom_call.1} parent=1 // pred_fallthru
      _
    // Predicated region
    $region14: #{tpu_custom_call.1} parent=1 // pred_check
      _
    $region15: #{tpu_custom_call.1} parent=1 // pred_check_branch
      %36 = sbr.rel (0) target = $region17
    $region16: #{tpu_custom_call.1} parent=1 // pred_region
      %37 = dma.done [#allocation3], 128
    $region17: #{tpu_custom_call.1} parent=1 // pred_fallthru
      _
    // Predicated region
    $region18: #{tpu_custom_call.1} parent=1 // pred_check
      _
    $region19: #{tpu_custom_call.1} parent=1 // pred_check_branch
      %39 = sbr.rel (0) target = $region21
    $region20: #{tpu_custom_call.1} parent=1 // pred_region
      %40 = dma.done [#allocation6], 6144
    $region21: #{tpu_custom_call.1} parent=1 // pred_fallthru
      _
    %v42 = vld [vmem:[#allocation2] sm:$0xff]
    %v43 = vpack.c.bf16 %v42, %v42
    %v44 = vld [vmem:[#allocation5] sm:$0xf]
    %v45 = vld [vmem:[#allocation5 + $0x4] sm:$0xf]
    %v46 = vld [vmem:[#allocation5 + $0x8] sm:$0xf]
    %v47 = vld [vmem:[#allocation5 + $0xc] sm:$0xf]
    %v48 = vld [vmem:[#allocation5 + $0x10] sm:$0xf]
    %v49 = vld [vmem:[#allocation5 + $0x14] sm:$0xf]
    %v50 = vld [vmem:[#allocation5 + $0x18] sm:$0xf]
    %v51 = vld [vmem:[#allocation5 + $0x1c] sm:$0xf]
    %v52 = vld [vmem:[#allocation5 + $0x20] sm:$0xf]
    %v53 = vld [vmem:[#allocation5 + $0x24] sm:$0xf]
    %v54 = vld [vmem:[#allocation5 + $0x28] sm:$0xf]
    %v55 = vld [vmem:[#allocation5 + $0x2c] sm:$0xf]
    %v56 = vld [vmem:[#allocation5 + $0x30] sm:$0xf]
    %v57 = vld [vmem:[#allocation5 + $0x34] sm:$0xf]
    %v58 = vld [vmem:[#allocation5 + $0x38] sm:$0xf]
    %v59 = vld [vmem:[#allocation5 + $0x3c] sm:$0xf]
    %v60 = vld [vmem:[%s2] sm:$0x1]
    %v62 = vlaneseq
    %v63 = vshrl.u32 %v62, 7
    %v64 = vsub.s32 0, %v63
    %v65 = vrot.slane %v60, %v64
    %v83 = vunpack.c.l.b16 %v44
    %v84 = vunpack.c.l.b16 %v45
    %v85 = vunpack.c.l.b16 %v46
    %v86 = vunpack.c.l.b16 %v47
    %v87 = vunpack.c.l.b16 %v48
    %v88 = vunpack.c.l.b16 %v49
    %v89 = vunpack.c.l.b16 %v50
    %v90 = vunpack.c.l.b16 %v51
    %v91 = vunpack.c.l.b16 %v52
    %v92 = vunpack.c.l.b16 %v53
    %v93 = vunpack.c.l.b16 %v54
    %v94 = vunpack.c.l.b16 %v55
    %v95 = vunpack.c.l.b16 %v56
    %v96 = vunpack.c.l.b16 %v57
    %v97 = vunpack.c.l.b16 %v58
    %v98 = vunpack.c.l.b16 %v59
    %v99 = vpack.c.b16 %v84, %v83
    %v100 = vpack.c.b16 %v86, %v85
    %v101 = vpack.c.b16 %v88, %v87
    %v102 = vpack.c.b16 %v90, %v89
    %v103 = vpack.c.b16 %v92, %v91
    %v104 = vpack.c.b16 %v94, %v93
    %v105 = vpack.c.b16 %v96, %v95
    %v106 = vpack.c.b16 %v98, %v97
    %115 = vmatprep.subr.bf16.mxu0 0
    %116 = vmatpush1.bf16.msra.mxu0 %v99
    %117 = vmatprep.subr.bf16.mxu0 0
    %118 = vmatpush1.bf16.msra.mxu0 %v100
    %119 = vmatprep.subr.bf16.mxu0 0
    %120 = vmatpush1.bf16.msra.mxu0 %v101
    %121 = vmatprep.subr.bf16.mxu0 0
    %122 = vmatpush1.bf16.msra.mxu0 %v102
    %123 = vmatprep.subr.bf16.mxu0 0
    %124 = vmatpush1.bf16.msra.mxu0 %v103
    %125 = vmatprep.subr.bf16.mxu0 0
    %126 = vmatpush1.bf16.msra.mxu0 %v104
    %127 = vmatprep.subr.bf16.mxu0 0
    %128 = vmatpush1.bf16.msra.mxu0 %v105
    %129 = vmatprep.subr.bf16.mxu0 0
    %130 = vmatpush1.bf16.msra.mxu0 %v106
    %131 = vmatprep.subr.bf16.mxu0 0
    %132 = vmatpush1.bf16.msra.mxu0 0
    %133 = vmatprep.subr.bf16.mxu0 0
    %134 = vmatpush1.bf16.msra.mxu0 0
    %135 = vmatprep.subr.bf16.mxu0 0
    %136 = vmatpush1.bf16.msra.mxu0 0
    %137 = vmatprep.subr.bf16.mxu0 0
    %138 = vmatpush1.bf16.msra.mxu0 0
    %139 = vmatprep.subr.bf16.mxu0 0
    %140 = vmatpush1.bf16.msra.mxu0 0
    %141 = vmatprep.subr.bf16.mxu0 0
    %142 = vmatpush1.bf16.msra.mxu0 0
    %143 = vmatprep.subr.bf16.mxu0 0
    %144 = vmatpush1.bf16.msra.mxu0 0
    %145 = vmatprep.subr.bf16.mxu0 0
    %146 = vmatpush1.bf16.msra.mxu0 0
    %147 = vmatprep.mubr.bf16.mxu0 0
    %148 = vmatmul.mubr.bf16.gmra.mrb[0].mxu0 %v43
    %v149 = vpop.f32.mrb[0].mxu0
    %v150 = vadd.f32 %v65, %v149
    %v151 = vpop.f32.mrb[0].mxu0
    %v152 = vpop.f32.mrb[0].mxu0
    %v153 = vpop.f32.mrb[0].mxu0
    %154 = vdwg.mxu0
    %v155 = vmax.f32 %v150, 0.0
    %v156 = vpack.c.bf16 %v155, %v155
    %s157 = scalar_lea.vmem [#allocation5], 64
    %v158 = vld [vmem:[%s157] sm:$0xf]
    %v159 = vld [vmem:[%s157 + $0x4] sm:$0xf]
    %v160 = vld [vmem:[%s157 + $0x8] sm:$0xf]
    %v161 = vld [vmem:[%s157 + $0xc] sm:$0xf]
    %v162 = vld [vmem:[%s157 + $0x10] sm:$0xf]
    %v163 = vld [vmem:[%s157 + $0x14] sm:$0xf]
    %v164 = vld [vmem:[%s157 + $0x18] sm:$0xf]
    %v165 = vld [vmem:[%s157 + $0x1c] sm:$0xf]
    %v166 = vld [vmem:[%s157 + $0x20] sm:$0xf]
    %v167 = vld [vmem:[%s157 + $0x24] sm:$0xf]
    %v168 = vld [vmem:[%s157 + $0x28] sm:$0xf]
    %v169 = vld [vmem:[%s157 + $0x2c] sm:$0xf]
    %v170 = vld [vmem:[%s157 + $0x30] sm:$0xf]
    %v171 = vld [vmem:[%s157 + $0x34] sm:$0xf]
    %v172 = vld [vmem:[%s157 + $0x38] sm:$0xf]
    %v173 = vld [vmem:[%s157 + $0x3c] sm:$0xf]
    %s174 = scalar_lea.vmem %s2, 1
    %v175 = vld [vmem:[%s174] sm:$0x1]
    %v177 = vlaneseq
    %v178 = vshrl.u32 %v177, 7
    %v179 = vsub.s32 0, %v178
    %v180 = vrot.slane %v175, %v179
    %v198 = vunpack.c.l.b16 %v158
    %v199 = vunpack.c.l.b16 %v159
    %v200 = vunpack.c.l.b16 %v160
    %v201 = vunpack.c.l.b16 %v161
    %v202 = vunpack.c.l.b16 %v162
    %v203 = vunpack.c.l.b16 %v163
    %v204 = vunpack.c.l.b16 %v164
    %v205 = vunpack.c.l.b16 %v165
    %v206 = vunpack.c.l.b16 %v166
    %v207 = vunpack.c.l.b16 %v167
    %v208 = vunpack.c.l.b16 %v168
    %v209 = vunpack.c.l.b16 %v169
    %v210 = vunpack.c.l.b16 %v170
    %v211 = vunpack.c.l.b16 %v171
    %v212 = vunpack.c.l.b16 %v172
    %v213 = vunpack.c.l.b16 %v173
    %v214 = vpack.c.b16 %v199, %v198
    %v215 = vpack.c.b16 %v201, %v200
    %v216 = vpack.c.b16 %v203, %v202
    %v217 = vpack.c.b16 %v205, %v204
    %v218 = vpack.c.b16 %v207, %v206
    %v219 = vpack.c.b16 %v209, %v208
    %v220 = vpack.c.b16 %v211, %v210
    %v221 = vpack.c.b16 %v213, %v212
    %230 = vmatprep.subr.bf16.mxu0 0
    %231 = vmatpush1.bf16.msra.mxu0 %v214
    %232 = vmatprep.subr.bf16.mxu0 0
    %233 = vmatpush1.bf16.msra.mxu0 %v215
    %234 = vmatprep.subr.bf16.mxu0 0
    %235 = vmatpush1.bf16.msra.mxu0 %v216
    %236 = vmatprep.subr.bf16.mxu0 0
    %237 = vmatpush1.bf16.msra.mxu0 %v217
    %238 = vmatprep.subr.bf16.mxu0 0
    %239 = vmatpush1.bf16.msra.mxu0 %v218
    %240 = vmatprep.subr.bf16.mxu0 0
    %241 = vmatpush1.bf16.msra.mxu0 %v219
    %242 = vmatprep.subr.bf16.mxu0 0
    %243 = vmatpush1.bf16.msra.mxu0 %v220
    %244 = vmatprep.subr.bf16.mxu0 0
    %245 = vmatpush1.bf16.msra.mxu0 %v221
    %246 = vmatprep.subr.bf16.mxu0 0
    %247 = vmatpush1.bf16.msra.mxu0 0
    %248 = vmatprep.subr.bf16.mxu0 0
    %249 = vmatpush1.bf16.msra.mxu0 0
    %250 = vmatprep.subr.bf16.mxu0 0
    %251 = vmatpush1.bf16.msra.mxu0 0
    %252 = vmatprep.subr.bf16.mxu0 0
    %253 = vmatpush1.bf16.msra.mxu0 0
    %254 = vmatprep.subr.bf16.mxu0 0
    %255 = vmatpush1.bf16.msra.mxu0 0
    %256 = vmatprep.subr.bf16.mxu0 0
    %257 = vmatpush1.bf16.msra.mxu0 0
    %258 = vmatprep.subr.bf16.mxu0 0
    %259 = vmatpush1.bf16.msra.mxu0 0
    %260 = vmatprep.subr.bf16.mxu0 0
    %261 = vmatpush1.bf16.msra.mxu0 0
    %262 = vmatprep.mubr.bf16.mxu0 0
    %263 = vmatmul.mubr.bf16.gmra.mrb[0].mxu0 %v156
    %v264 = vpop.f32.mrb[0].mxu0
    %v265 = vadd.f32 %v180, %v264
    %v266 = vpop.f32.mrb[0].mxu0
    %v267 = vpop.f32.mrb[0].mxu0
    %v268 = vpop.f32.mrb[0].mxu0
    %269 = vdwg.mxu0
    %v270 = vmax.f32 %v265, 0.0
    %v271 = vpack.c.bf16 %v270, %v270
    %s272 = scalar_lea.vmem [#allocation5], 128
    %v273 = vld [vmem:[%s272] sm:$0xf]
    %v274 = vld [vmem:[%s272 + $0x4] sm:$0xf]
    %v275 = vld [vmem:[%s272 + $0x8] sm:$0xf]
    %v276 = vld [vmem:[%s272 + $0xc] sm:$0xf]
    %v277 = vld [vmem:[%s272 + $0x10] sm:$0xf]
    %v278 = vld [vmem:[%s272 + $0x14] sm:$0xf]
    %v279 = vld [vmem:[%s272 + $0x18] sm:$0xf]
    %v280 = vld [vmem:[%s272 + $0x1c] sm:$0xf]
    %v281 = vld [vmem:[%s272 + $0x20] sm:$0xf]
    %v282 = vld [vmem:[%s272 + $0x24] sm:$0xf]
    %v283 = vld [vmem:[%s272 + $0x28] sm:$0xf]
    %v284 = vld [vmem:[%s272 + $0x2c] sm:$0xf]
    %v285 = vld [vmem:[%s272 + $0x30] sm:$0xf]
    %v286 = vld [vmem:[%s272 + $0x34] sm:$0xf]
    %v287 = vld [vmem:[%s272 + $0x38] sm:$0xf]
    %v288 = vld [vmem:[%s272 + $0x3c] sm:$0xf]
    %s289 = scalar_lea.vmem %s2, 2
    %v290 = vld [vmem:[%s289] sm:$0x1]
    %v292 = vlaneseq
    %v293 = vshrl.u32 %v292, 7
    %v294 = vsub.s32 0, %v293
    %v295 = vrot.slane %v290, %v294
    %v313 = vunpack.c.l.b16 %v273
    %v314 = vunpack.c.l.b16 %v274
    %v315 = vunpack.c.l.b16 %v275
    %v316 = vunpack.c.l.b16 %v276
    %v317 = vunpack.c.l.b16 %v277
    %v318 = vunpack.c.l.b16 %v278
    %v319 = vunpack.c.l.b16 %v279
    %v320 = vunpack.c.l.b16 %v280
    %v321 = vunpack.c.l.b16 %v281
    %v322 = vunpack.c.l.b16 %v282
    %v323 = vunpack.c.l.b16 %v283
    %v324 = vunpack.c.l.b16 %v284
    %v325 = vunpack.c.l.b16 %v285
    %v326 = vunpack.c.l.b16 %v286
    %v327 = vunpack.c.l.b16 %v287
    %v328 = vunpack.c.l.b16 %v288
    %v329 = vpack.c.b16 %v314, %v313
    %v330 = vpack.c.b16 %v316, %v315
    %v331 = vpack.c.b16 %v318, %v317
    %v332 = vpack.c.b16 %v320, %v319
    %v333 = vpack.c.b16 %v322, %v321
    %v334 = vpack.c.b16 %v324, %v323
    %v335 = vpack.c.b16 %v326, %v325
    %v336 = vpack.c.b16 %v328, %v327
    %345 = vmatprep.subr.bf16.mxu0 0
    %346 = vmatpush1.bf16.msra.mxu0 %v329
    %347 = vmatprep.subr.bf16.mxu0 0
    %348 = vmatpush1.bf16.msra.mxu0 %v330
    %349 = vmatprep.subr.bf16.mxu0 0
    %350 = vmatpush1.bf16.msra.mxu0 %v331
    %351 = vmatprep.subr.bf16.mxu0 0
    %352 = vmatpush1.bf16.msra.mxu0 %v332
    %353 = vmatprep.subr.bf16.mxu0 0
    %354 = vmatpush1.bf16.msra.mxu0 %v333
    %355 = vmatprep.subr.bf16.mxu0 0
    %356 = vmatpush1.bf16.msra.mxu0 %v334
    %357 = vmatprep.subr.bf16.mxu0 0
    %358 = vmatpush1.bf16.msra.mxu0 %v335
    %359 = vmatprep.subr.bf16.mxu0 0
    %360 = vmatpush1.bf16.msra.mxu0 %v336
    %361 = vmatprep.subr.bf16.mxu0 0
    %362 = vmatpush1.bf16.msra.mxu0 0
    %363 = vmatprep.subr.bf16.mxu0 0
    %364 = vmatpush1.bf16.msra.mxu0 0
    %365 = vmatprep.subr.bf16.mxu0 0
    %366 = vmatpush1.bf16.msra.mxu0 0
    %367 = vmatprep.subr.bf16.mxu0 0
    %368 = vmatpush1.bf16.msra.mxu0 0
    %369 = vmatprep.subr.bf16.mxu0 0
    %370 = vmatpush1.bf16.msra.mxu0 0
    %371 = vmatprep.subr.bf16.mxu0 0
    %372 = vmatpush1.bf16.msra.mxu0 0
    %373 = vmatprep.subr.bf16.mxu0 0
    %374 = vmatpush1.bf16.msra.mxu0 0
    %375 = vmatprep.subr.bf16.mxu0 0
    %376 = vmatpush1.bf16.msra.mxu0 0
    %377 = vmatprep.mubr.bf16.mxu0 0
    %378 = vmatmul.mubr.bf16.gmra.mrb[0].mxu0 %v271
    %v379 = vpop.f32.mrb[0].mxu0
    %v380 = vadd.f32 %v295, %v379
    %v381 = vpop.f32.mrb[0].mxu0
    %v382 = vpop.f32.mrb[0].mxu0
    %v383 = vpop.f32.mrb[0].mxu0
    %384 = vdwg.mxu0
    %v385 = vmax.f32 %v380, 0.0
    %v386 = vpack.c.bf16 %v385, %v385
    %s387 = scalar_lea.vmem [#allocation5], 192
    %v388 = vld [vmem:[%s387] sm:$0xf]
    %v389 = vld [vmem:[%s387 + $0x4] sm:$0xf]
    %v390 = vld [vmem:[%s387 + $0x8] sm:$0xf]
    %v391 = vld [vmem:[%s387 + $0xc] sm:$0xf]
    %v392 = vld [vmem:[%s387 + $0x10] sm:$0xf]
    %v393 = vld [vmem:[%s387 + $0x14] sm:$0xf]
    %v394 = vld [vmem:[%s387 + $0x18] sm:$0xf]
    %v395 = vld [vmem:[%s387 + $0x1c] sm:$0xf]
    %v396 = vld [vmem:[%s387 + $0x20] sm:$0xf]
    %v397 = vld [vmem:[%s387 + $0x24] sm:$0xf]
    %v398 = vld [vmem:[%s387 + $0x28] sm:$0xf]
    %v399 = vld [vmem:[%s387 + $0x2c] sm:$0xf]
    %v400 = vld [vmem:[%s387 + $0x30] sm:$0xf]
    %v401 = vld [vmem:[%s387 + $0x34] sm:$0xf]
    %v402 = vld [vmem:[%s387 + $0x38] sm:$0xf]
    %v403 = vld [vmem:[%s387 + $0x3c] sm:$0xf]
    %s404 = scalar_lea.vmem %s2, 3
    %v405 = vld [vmem:[%s404] sm:$0x1]
    %v407 = vlaneseq
    %v408 = vshrl.u32 %v407, 7
    %v409 = vsub.s32 0, %v408
    %v410 = vrot.slane %v405, %v409
    %v428 = vunpack.c.l.b16 %v388
    %v429 = vunpack.c.l.b16 %v389
    %v430 = vunpack.c.l.b16 %v390
    %v431 = vunpack.c.l.b16 %v391
    %v432 = vunpack.c.l.b16 %v392
    %v433 = vunpack.c.l.b16 %v393
    %v434 = vunpack.c.l.b16 %v394
    %v435 = vunpack.c.l.b16 %v395
    %v436 = vunpack.c.l.b16 %v396
    %v437 = vunpack.c.l.b16 %v397
    %v438 = vunpack.c.l.b16 %v398
    %v439 = vunpack.c.l.b16 %v399
    %v440 = vunpack.c.l.b16 %v400
    %v441 = vunpack.c.l.b16 %v401
    %v442 = vunpack.c.l.b16 %v402
    %v443 = vunpack.c.l.b16 %v403
    %v444 = vpack.c.b16 %v429, %v428
    %v445 = vpack.c.b16 %v431, %v430
    %v446 = vpack.c.b16 %v433, %v432
    %v447 = vpack.c.b16 %v435, %v434
    %v448 = vpack.c.b16 %v437, %v436
    %v449 = vpack.c.b16 %v439, %v438
    %v450 = vpack.c.b16 %v441, %v440
    %v451 = vpack.c.b16 %v443, %v442
    %460 = vmatprep.subr.bf16.mxu0 0
    %461 = vmatpush1.bf16.msra.mxu0 %v444
    %462 = vmatprep.subr.bf16.mxu0 0
    %463 = vmatpush1.bf16.msra.mxu0 %v445
    %464 = vmatprep.subr.bf16.mxu0 0
    %465 = vmatpush1.bf16.msra.mxu0 %v446
    %466 = vmatprep.subr.bf16.mxu0 0
    %467 = vmatpush1.bf16.msra.mxu0 %v447
    %468 = vmatprep.subr.bf16.mxu0 0
    %469 = vmatpush1.bf16.msra.mxu0 %v448
    %470 = vmatprep.subr.bf16.mxu0 0
    %471 = vmatpush1.bf16.msra.mxu0 %v449
    %472 = vmatprep.subr.bf16.mxu0 0
    %473 = vmatpush1.bf16.msra.mxu0 %v450
    %474 = vmatprep.subr.bf16.mxu0 0
    %475 = vmatpush1.bf16.msra.mxu0 %v451
    %476 = vmatprep.subr.bf16.mxu0 0
    %477 = vmatpush1.bf16.msra.mxu0 0
    %478 = vmatprep.subr.bf16.mxu0 0
    %479 = vmatpush1.bf16.msra.mxu0 0
    %480 = vmatprep.subr.bf16.mxu0 0
    %481 = vmatpush1.bf16.msra.mxu0 0
    %482 = vmatprep.subr.bf16.mxu0 0
    %483 = vmatpush1.bf16.msra.mxu0 0
    %484 = vmatprep.subr.bf16.mxu0 0
    %485 = vmatpush1.bf16.msra.mxu0 0
    %486 = vmatprep.subr.bf16.mxu0 0
    %487 = vmatpush1.bf16.msra.mxu0 0
    %488 = vmatprep.subr.bf16.mxu0 0
    %489 = vmatpush1.bf16.msra.mxu0 0
    %490 = vmatprep.subr.bf16.mxu0 0
    %491 = vmatpush1.bf16.msra.mxu0 0
    %492 = vmatprep.mubr.bf16.mxu0 0
    %493 = vmatmul.mubr.bf16.gmra.mrb[0].mxu0 %v386
    %v494 = vpop.f32.mrb[0].mxu0
    %v495 = vadd.f32 %v410, %v494
    %v496 = vpop.f32.mrb[0].mxu0
    %v497 = vpop.f32.mrb[0].mxu0
    %v498 = vpop.f32.mrb[0].mxu0
    %499 = vdwg.mxu0
    %v500 = vmax.f32 %v495, 0.0
    %v501 = vpack.c.bf16 %v500, %v500
    %s502 = scalar_lea.vmem [#allocation5], 256
    %v503 = vld [vmem:[%s502] sm:$0xf]
    %v504 = vld [vmem:[%s502 + $0x4] sm:$0xf]
    %v505 = vld [vmem:[%s502 + $0x8] sm:$0xf]
    %v506 = vld [vmem:[%s502 + $0xc] sm:$0xf]
    %v507 = vld [vmem:[%s502 + $0x10] sm:$0xf]
    %v508 = vld [vmem:[%s502 + $0x14] sm:$0xf]
    %v509 = vld [vmem:[%s502 + $0x18] sm:$0xf]
    %v510 = vld [vmem:[%s502 + $0x1c] sm:$0xf]
    %v511 = vld [vmem:[%s502 + $0x20] sm:$0xf]
    %v512 = vld [vmem:[%s502 + $0x24] sm:$0xf]
    %v513 = vld [vmem:[%s502 + $0x28] sm:$0xf]
    %v514 = vld [vmem:[%s502 + $0x2c] sm:$0xf]
    %v515 = vld [vmem:[%s502 + $0x30] sm:$0xf]
    %v516 = vld [vmem:[%s502 + $0x34] sm:$0xf]
    %v517 = vld [vmem:[%s502 + $0x38] sm:$0xf]
    %v518 = vld [vmem:[%s502 + $0x3c] sm:$0xf]
    %s519 = scalar_lea.vmem %s2, 4
    %v520 = vld [vmem:[%s519] sm:$0x1]
    %v522 = vlaneseq
    %v523 = vshrl.u32 %v522, 7
    %v524 = vsub.s32 0, %v523
    %v525 = vrot.slane %v520, %v524
    %v543 = vunpack.c.l.b16 %v503
    %v544 = vunpack.c.l.b16 %v504
    %v545 = vunpack.c.l.b16 %v505
    %v546 = vunpack.c.l.b16 %v506
    %v547 = vunpack.c.l.b16 %v507
    %v548 = vunpack.c.l.b16 %v508
    %v549 = vunpack.c.l.b16 %v509
    %v550 = vunpack.c.l.b16 %v510
    %v551 = vunpack.c.l.b16 %v511
    %v552 = vunpack.c.l.b16 %v512
    %v553 = vunpack.c.l.b16 %v513
    %v554 = vunpack.c.l.b16 %v514
    %v555 = vunpack.c.l.b16 %v515
    %v556 = vunpack.c.l.b16 %v516
    %v557 = vunpack.c.l.b16 %v517
    %v558 = vunpack.c.l.b16 %v518
    %v559 = vpack.c.b16 %v544, %v543
    %v560 = vpack.c.b16 %v546, %v545
    %v561 = vpack.c.b16 %v548, %v547
    %v562 = vpack.c.b16 %v550, %v549
    %v563 = vpack.c.b16 %v552, %v551
    %v564 = vpack.c.b16 %v554, %v553
    %v565 = vpack.c.b16 %v556, %v555
    %v566 = vpack.c.b16 %v558, %v557
    %575 = vmatprep.subr.bf16.mxu0 0
    %576 = vmatpush1.bf16.msra.mxu0 %v559
    %577 = vmatprep.subr.bf16.mxu0 0
    %578 = vmatpush1.bf16.msra.mxu0 %v560
    %579 = vmatprep.subr.bf16.mxu0 0
    %580 = vmatpush1.bf16.msra.mxu0 %v561
    %581 = vmatprep.subr.bf16.mxu0 0
    %582 = vmatpush1.bf16.msra.mxu0 %v562
    %583 = vmatprep.subr.bf16.mxu0 0
    %584 = vmatpush1.bf16.msra.mxu0 %v563
    %585 = vmatprep.subr.bf16.mxu0 0
    %586 = vmatpush1.bf16.msra.mxu0 %v564
    %587 = vmatprep.subr.bf16.mxu0 0
    %588 = vmatpush1.bf16.msra.mxu0 %v565
    %589 = vmatprep.subr.bf16.mxu0 0
    %590 = vmatpush1.bf16.msra.mxu0 %v566
    %591 = vmatprep.subr.bf16.mxu0 0
    %592 = vmatpush1.bf16.msra.mxu0 0
    %593 = vmatprep.subr.bf16.mxu0 0
    %594 = vmatpush1.bf16.msra.mxu0 0
    %595 = vmatprep.subr.bf16.mxu0 0
    %596 = vmatpush1.bf16.msra.mxu0 0
    %597 = vmatprep.subr.bf16.mxu0 0
    %598 = vmatpush1.bf16.msra.mxu0 0
    %599 = vmatprep.subr.bf16.mxu0 0
    %600 = vmatpush1.bf16.msra.mxu0 0
    %601 = vmatprep.subr.bf16.mxu0 0
    %602 = vmatpush1.bf16.msra.mxu0 0
    %603 = vmatprep.subr.bf16.mxu0 0
    %604 = vmatpush1.bf16.msra.mxu0 0
    %605 = vmatprep.subr.bf16.mxu0 0
    %606 = vmatpush1.bf16.msra.mxu0 0
    %607 = vmatprep.mubr.bf16.mxu0 0
    %608 = vmatmul.mubr.bf16.gmra.mrb[0].mxu0 %v501
    %v609 = vpop.f32.mrb[0].mxu0
    %v610 = vadd.f32 %v525, %v609
    %v611 = vpop.f32.mrb[0].mxu0
    %v612 = vpop.f32.mrb[0].mxu0
    %v613 = vpop.f32.mrb[0].mxu0
    %614 = vdwg.mxu0
    %v615 = vmax.f32 %v610, 0.0
    %v616 = vpack.c.bf16 %v615, %v615
    %s617 = scalar_lea.vmem [#allocation5], 320
    %v618 = vld [vmem:[%s617] sm:$0xf]
    %v619 = vld [vmem:[%s617 + $0x4] sm:$0xf]
    %v620 = vld [vmem:[%s617 + $0x8] sm:$0xf]
    %v621 = vld [vmem:[%s617 + $0xc] sm:$0xf]
    %v622 = vld [vmem:[%s617 + $0x10] sm:$0xf]
    %v623 = vld [vmem:[%s617 + $0x14] sm:$0xf]
    %v624 = vld [vmem:[%s617 + $0x18] sm:$0xf]
    %v625 = vld [vmem:[%s617 + $0x1c] sm:$0xf]
    %v626 = vld [vmem:[%s617 + $0x20] sm:$0xf]
    %v627 = vld [vmem:[%s617 + $0x24] sm:$0xf]
    %v628 = vld [vmem:[%s617 + $0x28] sm:$0xf]
    %v629 = vld [vmem:[%s617 + $0x2c] sm:$0xf]
    %v630 = vld [vmem:[%s617 + $0x30] sm:$0xf]
    %v631 = vld [vmem:[%s617 + $0x34] sm:$0xf]
    %v632 = vld [vmem:[%s617 + $0x38] sm:$0xf]
    %v633 = vld [vmem:[%s617 + $0x3c] sm:$0xf]
    %s634 = scalar_lea.vmem %s2, 5
    %v635 = vld [vmem:[%s634] sm:$0x1]
    %v637 = vlaneseq
    %v638 = vshrl.u32 %v637, 7
    %v639 = vsub.s32 0, %v638
    %v640 = vrot.slane %v635, %v639
    %v658 = vunpack.c.l.b16 %v618
    %v659 = vunpack.c.l.b16 %v619
    %v660 = vunpack.c.l.b16 %v620
    %v661 = vunpack.c.l.b16 %v621
    %v662 = vunpack.c.l.b16 %v622
    %v663 = vunpack.c.l.b16 %v623
    %v664 = vunpack.c.l.b16 %v624
    %v665 = vunpack.c.l.b16 %v625
    %v666 = vunpack.c.l.b16 %v626
    %v667 = vunpack.c.l.b16 %v627
    %v668 = vunpack.c.l.b16 %v628
    %v669 = vunpack.c.l.b16 %v629
    %v670 = vunpack.c.l.b16 %v630
    %v671 = vunpack.c.l.b16 %v631
    %v672 = vunpack.c.l.b16 %v632
    %v673 = vunpack.c.l.b16 %v633
    %v674 = vpack.c.b16 %v659, %v658
    %v675 = vpack.c.b16 %v661, %v660
    %v676 = vpack.c.b16 %v663, %v662
    %v677 = vpack.c.b16 %v665, %v664
    %v678 = vpack.c.b16 %v667, %v666
    %v679 = vpack.c.b16 %v669, %v668
    %v680 = vpack.c.b16 %v671, %v670
    %v681 = vpack.c.b16 %v673, %v672
    %690 = vmatprep.subr.bf16.mxu0 0
    %691 = vmatpush1.bf16.msra.mxu0 %v674
    %692 = vmatprep.subr.bf16.mxu0 0
    %693 = vmatpush1.bf16.msra.mxu0 %v675
    %694 = vmatprep.subr.bf16.mxu0 0
    %695 = vmatpush1.bf16.msra.mxu0 %v676
    %696 = vmatprep.subr.bf16.mxu0 0
    %697 = vmatpush1.bf16.msra.mxu0 %v677
    %698 = vmatprep.subr.bf16.mxu0 0
    %699 = vmatpush1.bf16.msra.mxu0 %v678
    %700 = vmatprep.subr.bf16.mxu0 0
    %701 = vmatpush1.bf16.msra.mxu0 %v679
    %702 = vmatprep.subr.bf16.mxu0 0
    %703 = vmatpush1.bf16.msra.mxu0 %v680
    %704 = vmatprep.subr.bf16.mxu0 0
    %705 = vmatpush1.bf16.msra.mxu0 %v681
    %706 = vmatprep.subr.bf16.mxu0 0
    %707 = vmatpush1.bf16.msra.mxu0 0
    %708 = vmatprep.subr.bf16.mxu0 0
    %709 = vmatpush1.bf16.msra.mxu0 0
    %710 = vmatprep.subr.bf16.mxu0 0
    %711 = vmatpush1.bf16.msra.mxu0 0
    %712 = vmatprep.subr.bf16.mxu0 0
    %713 = vmatpush1.bf16.msra.mxu0 0
    %714 = vmatprep.subr.bf16.mxu0 0
    %715 = vmatpush1.bf16.msra.mxu0 0
    %716 = vmatprep.subr.bf16.mxu0 0
    %717 = vmatpush1.bf16.msra.mxu0 0
    %718 = vmatprep.subr.bf16.mxu0 0
    %719 = vmatpush1.bf16.msra.mxu0 0
    %720 = vmatprep.subr.bf16.mxu0 0
    %721 = vmatpush1.bf16.msra.mxu0 0
    %722 = vmatprep.mubr.bf16.mxu0 0
    %723 = vmatmul.mubr.bf16.gmra.mrb[0].mxu0 %v616
    %v724 = vpop.f32.mrb[0].mxu0
    %v725 = vadd.f32 %v640, %v724
    %v726 = vpop.f32.mrb[0].mxu0
    %v727 = vpop.f32.mrb[0].mxu0
    %v728 = vpop.f32.mrb[0].mxu0
    %729 = vdwg.mxu0
    %730 = vst [vmem:[#allocation7] sm:$0xff] %v725
    // Predicated region
    $region22: #{tpu_custom_call.1} parent=1 // pred_check
      _
    $region23: #{tpu_custom_call.1} parent=1 // pred_check_branch
      %732 = sbr.rel (0) target = $region25
    $region24: #{tpu_custom_call.1} parent=1 // pred_region
      %s734 = ssub.s32 128, 128
      %735 = vsyncadd [#allocation4], %s734
      %s737 = sshll.u32 [#allocation7], 4
      %s738 = int_to_ptr.vmem [resolvable:$true] %s737
      %740 = dma.vmem_to_hbm [thread:$0]  %s738, 128, %s3, [#allocation4]
    $region25: #{tpu_custom_call.1} parent=1 // pred_fallthru
      _
    // Predicated region
    $region26: #{tpu_custom_call.1} parent=1 // pred_check
      _
    $region27: #{tpu_custom_call.1} parent=1 // pred_check_branch
      %742 = sbr.rel (0) target = $region29
    $region28: #{tpu_custom_call.1} parent=1 // pred_region
      %743 = dma.done [#allocation4], 128
    $region29: #{tpu_custom_call.1} parent=1 // pred_fallthru
      _
    %744 = vsyncpa [#allocation3], 1
    %745 = vsyncpa [#allocation6], 1
    %746 = vsyncpa [#allocation4], 1

</llo_original>
